<compile_context>
chip_gen: v7x
topology: tpu7x:2x2x1
jax: 0.10.0
libtpu: 0.0.40
codegen_flags: <defaults>
</compile_context>

<pallas_src>
import functools
import math

import jax
import jax.numpy as jnp
from jax.experimental import pallas as pl
from jax.experimental.pallas import tpu as pltpu


def mhsa_kernel(x_ref, wqkv_ref, wo_ref, bqkv_ref, bo_ref, o_ref,
                *, num_heads, head_dim, block_b, seq, embed, compute_dtype):
    M = block_b * seq
    E = embed
    D = head_dim

    # Fold batch rows so the projection / output matmuls see M = block_b * seq rows.
    x = x_ref[...].reshape(M, E).astype(compute_dtype)

    # Fused Q/K/V projection: one (M, E) @ (E, 3E) MXU matmul, f32 accumulation.
    qkv_f32 = jnp.dot(x, wqkv_ref[...], preferred_element_type=jnp.float32)
    qkv_f32 = qkv_f32 + bqkv_ref[...].astype(jnp.float32)
    # Single cast right after the bias add so only one (M, 3E) copy stays live.
    qkv = qkv_f32.astype(compute_dtype)

    # Per-head Q K^T, batched over the block's batch rows (single leading batch dim).
    # Heads remain a short Python loop (num_heads iterations) instead of the previous
    # block_b * num_heads unroll of tiny 2-D matmuls.
    energies = []
    for h in range(num_heads):
        q_h = qkv[:, h * D:(h + 1) * D].reshape(block_b, seq, D)
        k_h = qkv[:, E + h * D:E + (h + 1) * D].reshape(block_b, seq, D)
        energies.append(
            jnp.einsum('bqd,bkd->bqk', q_h, k_h,
                       preferred_element_type=jnp.float32))
    # (block_b, H, S, S) f32; scale matches torch (Q K^T / sqrt(D)).
    energy = jnp.stack(energies, axis=1) * (1.0 / math.sqrt(D))

    # Softmax batched over every (batch, head) tile at once; EUP reciprocal for the
    # normalization instead of a divide.
    m = jnp.max(energy, axis=-1, keepdims=True)
    p = jnp.exp(energy - m)
    denom = jnp.sum(p, axis=-1, keepdims=True)
    attn = (p * pl.reciprocal(denom, approx=True)).astype(compute_dtype)
    # TODO(synk): attention-map dropout is identity here (dropout=0.0 / eval mode), and the
    # PyTorch side-effect of stashing self.attention_map is not reproduced.

    # Per-head attn @ V, batched over batch rows; results are concatenated along the lane
    # axis so the context tensor is produced directly in (M, E) layout — no VMEM scratch
    # accumulator and no masked 32-lane stores.
    ctx_parts = []
    for h in range(num_heads):
        v_h = qkv[:, 2 * E + h * D:2 * E + (h + 1) * D].reshape(block_b, seq, D)
        pv = jnp.einsum('bqk,bkd->bqd', attn[:, h], v_h,
                        preferred_element_type=jnp.float32)
        ctx_parts.append(pv.reshape(M, D).astype(compute_dtype))
    ctx = jnp.concatenate(ctx_parts, axis=-1)                      # (M, E)

    # Output projection over the whole folded block: (M, E) @ (E, E), f32 accumulate.
    out = jnp.dot(ctx, wo_ref[...], preferred_element_type=jnp.float32)
    out = out + bo_ref[...].astype(jnp.float32)
    o_ref[...] = out.reshape(block_b, seq, E).astype(o_ref.dtype)


def _pick_block_b(B, S, E, H, x_itemsize, out_itemsize, compute_itemsize, vmem_budget):
    """Largest divisor of B that (a) keeps >=2 grid steps when B>=2, (b) targets M<=256,
    (c) fits the per-generation VMEM budget, (d) stays sublane-aligned."""
    if S % 8 != 0:
        # Keep per-batch-row reshapes of the folded (M, *) tensors on (8,128) boundaries.
        return 1

    def vmem_need(bb):
        M = bb * S
        io = 2 * M * E * (x_itemsize + out_itemsize)                   # double-buffered x / out
        w = 2 * ((3 * E * E + E * E) * compute_itemsize + 4 * E * 4)   # weights + biases (2 bufs)
        tmp = M * 3 * E * (4 + compute_itemsize)                       # f32 qkv + compute copy
        tmp += 2 * bb * H * S * S * (4 + compute_itemsize)             # energy / attn tiles
        tmp += 2 * M * E * (4 + compute_itemsize)                      # pv pieces / ctx / out
        return io + w + tmp

    target_m = 256          # fill the 256-wide MXU rows on v6e / v7x; harmless on v5e
    best = 1
    for bb in range(1, B + 1):
        if B % bb:
            continue
        if B >= 2 and B // bb < 2:      # keep >= 2 grid steps so megacore / 2 TCs have work
            continue
        if bb != 1 and bb * S > target_m:
            continue
        if vmem_need(bb) > vmem_budget:
            continue
        best = bb
    return best


def multi_head_self_attention(x, params, num_heads, *, compute_dtype=jnp.bfloat16,
                              block_b=None):
    """x: (B, S, E). params: dict with fused 'w_qkv' (E,3E), 'b_qkv' (1,3E), 'wo' (E,E), 'bo' (1,E)."""
    B, S, E = x.shape
    assert E % num_heads == 0
    head_dim = E // num_heads

    # Generation-aware VMEM budget: ~75% of the TensorCore's VMEM (48 MiB on v7x,
    # 96 MiB on v5e/v6e). Used both for block_b selection and as the compiler limit.
    try:
        vmem_cap = pltpu.get_tpu_info().vmem_capacity_bytes
    except Exception:
        vmem_cap = 64 * 1024 * 1024
    vmem_budget = (int(vmem_cap) * 3) // 4

    compute_itemsize = jnp.dtype(compute_dtype).itemsize
    if block_b is None:
        block_b = _pick_block_b(B, S, E, num_heads,
                                jnp.dtype(x.dtype).itemsize,
                                jnp.dtype(x.dtype).itemsize,
                                compute_itemsize, vmem_budget)
    assert B % block_b == 0

    kernel = functools.partial(
        mhsa_kernel, num_heads=num_heads, head_dim=head_dim,
        block_b=block_b, seq=S, embed=E, compute_dtype=compute_dtype)

    # Ship matmul weights already in the compute dtype (halves weight DMA / VMEM for bf16).
    w_qkv = params["w_qkv"].astype(compute_dtype)
    w_o = params["wo"].astype(compute_dtype)
    # TODO(synk): with constant index_maps the weights may still get a second pipeline
    # buffer; if the lowered MLIR shows a redundant buffer, stage them once via a manual
    # make_async_copy instead.

    return pl.pallas_call(
        kernel,
        out_shape=jax.ShapeDtypeStruct((B, S, E), x.dtype),
        grid_spec=pltpu.PrefetchScalarGridSpec(
            num_scalar_prefetch=0,
            grid=(B // block_b,),
            in_specs=[
                pl.BlockSpec((block_b, S, E), lambda i: (i, 0, 0)),   # X
                pl.BlockSpec((E, 3 * E), lambda i: (0, 0)),           # fused W_qkv
                pl.BlockSpec((E, E), lambda i: (0, 0)),               # W_out
                pl.BlockSpec((1, 3 * E), lambda i: (0, 0)),           # fused b_qkv (f32)
                pl.BlockSpec((1, E), lambda i: (0, 0)),               # b_out (f32)
            ],
            out_specs=pl.BlockSpec((block_b, S, E), lambda i: (i, 0, 0)),
        ),
        compiler_params=pltpu.CompilerParams(
            dimension_semantics=("parallel",),
            vmem_limit_bytes=vmem_budget,
        ),
    )(x, w_qkv, w_o, params["b_qkv"], params["bo"])


def init_params(key, embedding_size):
    """Torch-default-style init (uniform +/- 1/sqrt(fan_in)). Weights stored as (in, out)."""
    E = embedding_size
    bound = 1.0 / math.sqrt(E)
    ks = jax.random.split(key, 8)
    u = lambda k, shape: jax.random.uniform(k, shape, jnp.float32, -bound, bound)
    wq, bq = u(ks[0], (E, E)), u(ks[1], (1, E))
    wk, bk = u(ks[2], (E, E)), u(ks[3], (1, E))
    wv, bv = u(ks[4], (E, E)), u(ks[5], (1, E))
    wo, bo = u(ks[6], (E, E)), u(ks[7], (1, E))
    return {
        "wq": wq, "bq": bq, "wk": wk, "bk": bk, "wv": wv, "bv": bv,
        "wo": wo, "bo": bo,
        # Fused QKV weight/bias so the kernel does a single (E, 3E) projection matmul.
        "w_qkv": jnp.concatenate([wq, wk, wv], axis=1),
        "b_qkv": jnp.concatenate([bq, bk, bv], axis=1),
    }


def _reference(x, params, num_heads):
    """Pure-JAX reference mirroring the PyTorch forward."""
    B, S, E = x.shape
    D = E // num_heads
    q = x @ params["wq"] + params["bq"]
    k = x @ params["wk"] + params["bk"]
    v = x @ params["wv"] + params["bv"]
    q = q.reshape(B, S, num_heads, D).transpose(0, 2, 1, 3)
    k = k.reshape(B, S, num_heads, D).transpose(0, 2, 1, 3)
    v = v.reshape(B, S, num_heads, D).transpose(0, 2, 1, 3)
    energy = jnp.einsum("bhqd,bhkd->bhqk", q, k) / math.sqrt(D)
    attn = jax.nn.softmax(energy, axis=-1)
    out = jnp.einsum("bhqk,bhkd->bhqd", attn, v)
    out = out.transpose(0, 2, 1, 3).reshape(B, S, E)
    return out @ params["wo"] + params["bo"]


if __name__ == "__main__":
    # E = 128 keeps the output block lane-dense (multiple of 128); heads=4 -> D=32.
    batch, seq, embed, heads = 2, 8, 128, 4

    key = jax.random.PRNGKey(0)
    k_x, k_p = jax.random.split(key)
    x = jax.random.normal(k_x, (batch, seq, embed), jnp.float32)
    params = init_params(k_p, embed)

    ref = _reference(x, params, heads)

    # Default bf16-fed MXU path (bf16-native MXU on v5e/v6e/v7x), f32 accumulate + softmax.
    out_bf16 = jax.block_until_ready(multi_head_self_attention(x, params, heads))
    assert out_bf16.shape == (batch, seq, embed)
    assert jnp.allclose(out_bf16, ref, atol=5e-2, rtol=5e-2), \
        float(jnp.max(jnp.abs(out_bf16 - ref)))

    # f32-fed MXU path (tighter check; approx reciprocal -> slightly relaxed tolerance).
    out_f32 = jax.block_until_ready(
        multi_head_self_attention(x, params, heads, compute_dtype=jnp.float32))
    assert out_f32.shape == (batch, seq, embed)
    assert jnp.allclose(out_f32, ref, atol=5e-3, rtol=5e-3), \
        float(jnp.max(jnp.abs(out_f32 - ref)))

    print("KERNEL_OK")
</pallas_src>

<mosaic_0001>
module attributes {stable_mosaic.version = 11 : i64} {
  func.func @mhsa_kernel(%arg0: i32, %arg1: memref<1x8x128xf32, #tpu.memory_space<vmem>>, %arg2: memref<128x384xbf16, #tpu.memory_space<vmem>>, %arg3: memref<128x128xbf16, #tpu.memory_space<vmem>>, %arg4: memref<1x384xf32, #tpu.memory_space<vmem>>, %arg5: memref<1x128xf32, #tpu.memory_space<vmem>>, %arg6: memref<1x8x128xf32, #tpu.memory_space<vmem>>) attributes {dimension_semantics = [#tpu.dimension_semantics<parallel>], iteration_bounds = array<i64: 2>, scalar_prefetch = 0 : i64, scratch_operands = 0 : i64, tpu.core_type = #tpu.core_type<tc>, window_params = [{transform_indices = @transform_0, window_bounds = array<i64: 1, 8, 128>}, {pipeline_mode = #tpu.pipeline_mode<synchronous>, transform_indices = @transform_1, window_bounds = array<i64: 128, 384>}, {pipeline_mode = #tpu.pipeline_mode<synchronous>, transform_indices = @transform_2, window_bounds = array<i64: 128, 128>}, {pipeline_mode = #tpu.pipeline_mode<synchronous>, transform_indices = @transform_3, window_bounds = array<i64: 1, 384>}, {pipeline_mode = #tpu.pipeline_mode<synchronous>, transform_indices = @transform_4, window_bounds = array<i64: 1, 128>}, {transform_indices = @transform_5, window_bounds = array<i64: 1, 8, 128>}]} {
    %c0 = arith.constant 0 : index
    %c0_0 = arith.constant 0 : index
    %c0_1 = arith.constant 0 : index
    %0 = vector.load %arg1[%c0, %c0_0, %c0_1] : memref<1x8x128xf32, #tpu.memory_space<vmem>>, vector<1x8x128xf32>
    %1 = vector.shape_cast %0 : vector<1x8x128xf32> to vector<8x128xf32>
    %2 = arith.truncf %1 : vector<8x128xf32> to vector<8x128xbf16>
    %c0_2 = arith.constant 0 : index
    %c0_3 = arith.constant 0 : index
    %3 = vector.load %arg2[%c0_2, %c0_3] : memref<128x384xbf16, #tpu.memory_space<vmem>>, vector<128x384xbf16>
    %cst = arith.constant dense<0.000000e+00> : vector<8x384xf32>
    %4 = tpu.matmul %2, %3, %cst {dimension_numbers = #tpu.dot_dimension_numbers<[1], [0], [0], [1], [0, 0, 1, 1], [], []>} : vector<8x128xbf16>, vector<128x384xbf16>, vector<8x384xf32> -> vector<8x384xf32>
    %c0_4 = arith.constant 0 : index
    %c0_5 = arith.constant 0 : index
    %5 = vector.load %arg4[%c0_4, %c0_5] : memref<1x384xf32, #tpu.memory_space<vmem>>, vector<1x384xf32>
    %6 = vector.broadcast %5 : vector<1x384xf32> to vector<8x384xf32>
    %7 = arith.addf %4, %6 : vector<8x384xf32>
    %8 = arith.truncf %7 : vector<8x384xf32> to vector<8x384xbf16>
    %9 = vector.extract_strided_slice %8 {offsets = [0, 0], sizes = [8, 32], strides = [1, 1]} : vector<8x384xbf16> to vector<8x32xbf16>
    %10 = vector.shape_cast %9 : vector<8x32xbf16> to vector<1x8x32xbf16>
    %11 = vector.extract_strided_slice %8 {offsets = [0, 128], sizes = [8, 32], strides = [1, 1]} : vector<8x384xbf16> to vector<8x32xbf16>
    %12 = vector.shape_cast %11 : vector<8x32xbf16> to vector<1x8x32xbf16>
    "tpu.trace_start"() <{level = 10 : i32, message = "bqd,bkd->bqk"}> : () -> ()
    %cst_6 = arith.constant dense<0.000000e+00> : vector<1x8x8xf32>
    %13 = tpu.matmul %10, %12, %cst_6 {dimension_numbers = #tpu.dot_dimension_numbers<[2], [2], [1], [1], [0, 0, 0, 1, 1, 1], [0], [0]>} : vector<1x8x32xbf16>, vector<1x8x32xbf16>, vector<1x8x8xf32> -> vector<1x8x8xf32>
    "tpu.trace_stop"() : () -> ()
    %14 = vector.extract_strided_slice %8 {offsets = [0, 32], sizes = [8, 32], strides = [1, 1]} : vector<8x384xbf16> to vector<8x32xbf16>
    %15 = vector.shape_cast %14 : vector<8x32xbf16> to vector<1x8x32xbf16>
    %16 = vector.extract_strided_slice %8 {offsets = [0, 160], sizes = [8, 32], strides = [1, 1]} : vector<8x384xbf16> to vector<8x32xbf16>
    %17 = vector.shape_cast %16 : vector<8x32xbf16> to vector<1x8x32xbf16>
    "tpu.trace_start"() <{level = 10 : i32, message = "bqd,bkd->bqk"}> : () -> ()
    %cst_7 = arith.constant dense<0.000000e+00> : vector<1x8x8xf32>
    %18 = tpu.matmul %15, %17, %cst_7 {dimension_numbers = #tpu.dot_dimension_numbers<[2], [2], [1], [1], [0, 0, 0, 1, 1, 1], [0], [0]>} : vector<1x8x32xbf16>, vector<1x8x32xbf16>, vector<1x8x8xf32> -> vector<1x8x8xf32>
    "tpu.trace_stop"() : () -> ()
    %19 = vector.extract_strided_slice %8 {offsets = [0, 64], sizes = [8, 32], strides = [1, 1]} : vector<8x384xbf16> to vector<8x32xbf16>
    %20 = vector.shape_cast %19 : vector<8x32xbf16> to vector<1x8x32xbf16>
    %21 = vector.extract_strided_slice %8 {offsets = [0, 192], sizes = [8, 32], strides = [1, 1]} : vector<8x384xbf16> to vector<8x32xbf16>
    %22 = vector.shape_cast %21 : vector<8x32xbf16> to vector<1x8x32xbf16>
    "tpu.trace_start"() <{level = 10 : i32, message = "bqd,bkd->bqk"}> : () -> ()
    %cst_8 = arith.constant dense<0.000000e+00> : vector<1x8x8xf32>
    %23 = tpu.matmul %20, %22, %cst_8 {dimension_numbers = #tpu.dot_dimension_numbers<[2], [2], [1], [1], [0, 0, 0, 1, 1, 1], [0], [0]>} : vector<1x8x32xbf16>, vector<1x8x32xbf16>, vector<1x8x8xf32> -> vector<1x8x8xf32>
    "tpu.trace_stop"() : () -> ()
    %24 = vector.extract_strided_slice %8 {offsets = [0, 96], sizes = [8, 32], strides = [1, 1]} : vector<8x384xbf16> to vector<8x32xbf16>
    %25 = vector.shape_cast %24 : vector<8x32xbf16> to vector<1x8x32xbf16>
    %26 = vector.extract_strided_slice %8 {offsets = [0, 224], sizes = [8, 32], strides = [1, 1]} : vector<8x384xbf16> to vector<8x32xbf16>
    %27 = vector.shape_cast %26 : vector<8x32xbf16> to vector<1x8x32xbf16>
    "tpu.trace_start"() <{level = 10 : i32, message = "bqd,bkd->bqk"}> : () -> ()
    %cst_9 = arith.constant dense<0.000000e+00> : vector<1x8x8xf32>
    %28 = tpu.matmul %25, %27, %cst_9 {dimension_numbers = #tpu.dot_dimension_numbers<[2], [2], [1], [1], [0, 0, 0, 1, 1, 1], [0], [0]>} : vector<1x8x32xbf16>, vector<1x8x32xbf16>, vector<1x8x8xf32> -> vector<1x8x8xf32>
    "tpu.trace_stop"() : () -> ()
    %29 = vector.shape_cast %13 : vector<1x8x8xf32> to vector<1x1x8x8xf32>
    %30 = vector.shape_cast %18 : vector<1x8x8xf32> to vector<1x1x8x8xf32>
    %31 = vector.shape_cast %23 : vector<1x8x8xf32> to vector<1x1x8x8xf32>
    %32 = vector.shape_cast %28 : vector<1x8x8xf32> to vector<1x1x8x8xf32>
    %33 = tpu.concatenate %29, %30, %31, %32 in 1 : vector<1x1x8x8xf32>, vector<1x1x8x8xf32>, vector<1x1x8x8xf32>, vector<1x1x8x8xf32> -> vector<1x4x8x8xf32>
    %cst_10 = arith.constant 0.176776692 : f32
    %34 = vector.broadcast %cst_10 : f32 to vector<1x4x8x8xf32>
    %35 = arith.mulf %33, %34 : vector<1x4x8x8xf32>
    %cst_11 = arith.constant dense<0xFF800000> : vector<1x4x8xf32>
    %36 = vector.multi_reduction <maximumf>, %35, %cst_11 [3] : vector<1x4x8x8xf32> to vector<1x4x8xf32>
    %37 = vector.shape_cast %36 : vector<1x4x8xf32> to vector<1x4x8x1xf32>
    %38 = vector.broadcast %37 : vector<1x4x8x1xf32> to vector<1x4x8x8xf32>
    %39 = arith.subf %35, %38 : vector<1x4x8x8xf32>
    %40 = math.exp %39 : vector<1x4x8x8xf32>
    %cst_12 = arith.constant dense<0.000000e+00> : vector<1x4x8xf32>
    %41 = vector.multi_reduction <add>, %40, %cst_12 [3] : vector<1x4x8x8xf32> to vector<1x4x8xf32>
    %42 = vector.shape_cast %41 : vector<1x4x8xf32> to vector<1x4x8x1xf32>
    %43 = tpu.reciprocal %42 {approx = true} : vector<1x4x8x1xf32> -> vector<1x4x8x1xf32>
    %44 = vector.broadcast %43 : vector<1x4x8x1xf32> to vector<1x4x8x8xf32>
    %45 = arith.mulf %40, %44 : vector<1x4x8x8xf32>
    %46 = arith.truncf %45 : vector<1x4x8x8xf32> to vector<1x4x8x8xbf16>
    %47 = vector.extract_strided_slice %8 {offsets = [0, 256], sizes = [8, 32], strides = [1, 1]} : vector<8x384xbf16> to vector<8x32xbf16>
    %48 = vector.shape_cast %47 : vector<8x32xbf16> to vector<1x8x32xbf16>
    %49 = vector.extract_strided_slice %46 {offsets = [0, 0, 0, 0], sizes = [1, 1, 8, 8], strides = [1, 1, 1, 1]} : vector<1x4x8x8xbf16> to vector<1x1x8x8xbf16>
    %50 = vector.shape_cast %49 : vector<1x1x8x8xbf16> to vector<1x8x8xbf16>
    "tpu.trace_start"() <{level = 10 : i32, message = "bqk,bkd->bqd"}> : () -> ()
    %cst_13 = arith.constant dense<0.000000e+00> : vector<1x8x32xf32>
    %51 = tpu.matmul %50, %48, %cst_13 {dimension_numbers = #tpu.dot_dimension_numbers<[2], [1], [1], [2], [0, 0, 0, 1, 1, 2], [0], [0]>} : vector<1x8x8xbf16>, vector<1x8x32xbf16>, vector<1x8x32xf32> -> vector<1x8x32xf32>
    "tpu.trace_stop"() : () -> ()
    %52 = vector.shape_cast %51 : vector<1x8x32xf32> to vector<8x32xf32>
    %53 = arith.truncf %52 : vector<8x32xf32> to vector<8x32xbf16>
    %54 = vector.extract_strided_slice %8 {offsets = [0, 288], sizes = [8, 32], strides = [1, 1]} : vector<8x384xbf16> to vector<8x32xbf16>
    %55 = vector.shape_cast %54 : vector<8x32xbf16> to vector<1x8x32xbf16>
    %56 = vector.extract_strided_slice %46 {offsets = [0, 1, 0, 0], sizes = [1, 1, 8, 8], strides = [1, 1, 1, 1]} : vector<1x4x8x8xbf16> to vector<1x1x8x8xbf16>
    %57 = vector.shape_cast %56 : vector<1x1x8x8xbf16> to vector<1x8x8xbf16>
    "tpu.trace_start"() <{level = 10 : i32, message = "bqk,bkd->bqd"}> : () -> ()
    %cst_14 = arith.constant dense<0.000000e+00> : vector<1x8x32xf32>
    %58 = tpu.matmul %57, %55, %cst_14 {dimension_numbers = #tpu.dot_dimension_numbers<[2], [1], [1], [2], [0, 0, 0, 1, 1, 2], [0], [0]>} : vector<1x8x8xbf16>, vector<1x8x32xbf16>, vector<1x8x32xf32> -> vector<1x8x32xf32>
    "tpu.trace_stop"() : () -> ()
    %59 = vector.shape_cast %58 : vector<1x8x32xf32> to vector<8x32xf32>
    %60 = arith.truncf %59 : vector<8x32xf32> to vector<8x32xbf16>
    %61 = vector.extract_strided_slice %8 {offsets = [0, 320], sizes = [8, 32], strides = [1, 1]} : vector<8x384xbf16> to vector<8x32xbf16>
    %62 = vector.shape_cast %61 : vector<8x32xbf16> to vector<1x8x32xbf16>
    %63 = vector.extract_strided_slice %46 {offsets = [0, 2, 0, 0], sizes = [1, 1, 8, 8], strides = [1, 1, 1, 1]} : vector<1x4x8x8xbf16> to vector<1x1x8x8xbf16>
    %64 = vector.shape_cast %63 : vector<1x1x8x8xbf16> to vector<1x8x8xbf16>
    "tpu.trace_start"() <{level = 10 : i32, message = "bqk,bkd->bqd"}> : () -> ()
    %cst_15 = arith.constant dense<0.000000e+00> : vector<1x8x32xf32>
    %65 = tpu.matmul %64, %62, %cst_15 {dimension_numbers = #tpu.dot_dimension_numbers<[2], [1], [1], [2], [0, 0, 0, 1, 1, 2], [0], [0]>} : vector<1x8x8xbf16>, vector<1x8x32xbf16>, vector<1x8x32xf32> -> vector<1x8x32xf32>
    "tpu.trace_stop"() : () -> ()
    %66 = vector.shape_cast %65 : vector<1x8x32xf32> to vector<8x32xf32>
    %67 = arith.truncf %66 : vector<8x32xf32> to vector<8x32xbf16>
    %68 = vector.extract_strided_slice %8 {offsets = [0, 352], sizes = [8, 32], strides = [1, 1]} : vector<8x384xbf16> to vector<8x32xbf16>
    %69 = vector.shape_cast %68 : vector<8x32xbf16> to vector<1x8x32xbf16>
    %70 = vector.extract_strided_slice %46 {offsets = [0, 3, 0, 0], sizes = [1, 1, 8, 8], strides = [1, 1, 1, 1]} : vector<1x4x8x8xbf16> to vector<1x1x8x8xbf16>
    %71 = vector.shape_cast %70 : vector<1x1x8x8xbf16> to vector<1x8x8xbf16>
    "tpu.trace_start"() <{level = 10 : i32, message = "bqk,bkd->bqd"}> : () -> ()
    %cst_16 = arith.constant dense<0.000000e+00> : vector<1x8x32xf32>
    %72 = tpu.matmul %71, %69, %cst_16 {dimension_numbers = #tpu.dot_dimension_numbers<[2], [1], [1], [2], [0, 0, 0, 1, 1, 2], [0], [0]>} : vector<1x8x8xbf16>, vector<1x8x32xbf16>, vector<1x8x32xf32> -> vector<1x8x32xf32>
    "tpu.trace_stop"() : () -> ()
    %73 = vector.shape_cast %72 : vector<1x8x32xf32> to vector<8x32xf32>
    %74 = arith.truncf %73 : vector<8x32xf32> to vector<8x32xbf16>
    %75 = tpu.concatenate %53, %60, %67, %74 in 1 : vector<8x32xbf16>, vector<8x32xbf16>, vector<8x32xbf16>, vector<8x32xbf16> -> vector<8x128xbf16>
    %c0_17 = arith.constant 0 : index
    %c0_18 = arith.constant 0 : index
    %76 = vector.load %arg3[%c0_17, %c0_18] : memref<128x128xbf16, #tpu.memory_space<vmem>>, vector<128x128xbf16>
    %cst_19 = arith.constant dense<0.000000e+00> : vector<8x128xf32>
    %77 = tpu.matmul %75, %76, %cst_19 {dimension_numbers = #tpu.dot_dimension_numbers<[1], [0], [0], [1], [0, 0, 1, 1], [], []>} : vector<8x128xbf16>, vector<128x128xbf16>, vector<8x128xf32> -> vector<8x128xf32>
    %c0_20 = arith.constant 0 : index
    %c0_21 = arith.constant 0 : index
    %78 = vector.load %arg5[%c0_20, %c0_21] : memref<1x128xf32, #tpu.memory_space<vmem>>, vector<1x128xf32>
    %79 = vector.broadcast %78 : vector<1x128xf32> to vector<8x128xf32>
    %80 = arith.addf %77, %79 : vector<8x128xf32>
    %81 = vector.shape_cast %80 : vector<8x128xf32> to vector<1x8x128xf32>
    %c0_22 = arith.constant 0 : index
    %c0_23 = arith.constant 0 : index
    %c0_24 = arith.constant 0 : index
    %82 = vector.load %arg6[%c0_22, %c0_23, %c0_24] : memref<1x8x128xf32, #tpu.memory_space<vmem>>, vector<1x8x128xf32>
    tpu.vector_store %arg6[%c0_22, %c0_23, %c0_24], %81 {strides = array<i32>} : memref<1x8x128xf32, #tpu.memory_space<vmem>>, vector<1x8x128xf32>,
    return
  }
  func.func @transform_0(%arg0: i32) -> (i32, i32, i32) {
    %c0_i32 = arith.constant 0 : i32
    %c0_i32_0 = arith.constant 0 : i32
    %c0_i32_1 = arith.constant 0 : i32
    return %arg0, %c0_i32, %c0_i32_0 : i32, i32, i32
  }
  func.func @transform_1(%arg0: i32) -> (i32, i32) {
    %c0_i32 = arith.constant 0 : i32
    %c0_i32_0 = arith.constant 0 : i32
    %c0_i32_1 = arith.constant 0 : i32
    return %c0_i32, %c0_i32_0 : i32, i32
  }
  func.func @transform_2(%arg0: i32) -> (i32, i32) {
    %c0_i32 = arith.constant 0 : i32
    %c0_i32_0 = arith.constant 0 : i32
    %c0_i32_1 = arith.constant 0 : i32
    return %c0_i32, %c0_i32_0 : i32, i32
  }
  func.func @transform_3(%arg0: i32) -> (i32, i32) {
    %c0_i32 = arith.constant 0 : i32
    %c0_i32_0 = arith.constant 0 : i32
    %c0_i32_1 = arith.constant 0 : i32
    return %c0_i32, %c0_i32_0 : i32, i32
  }
  func.func @transform_4(%arg0: i32) -> (i32, i32) {
    %c0_i32 = arith.constant 0 : i32
    %c0_i32_0 = arith.constant 0 : i32
    %c0_i32_1 = arith.constant 0 : i32
    return %c0_i32, %c0_i32_0 : i32, i32
  }
  func.func @transform_5(%arg0: i32) -> (i32, i32, i32) {
    %c0_i32 = arith.constant 0 : i32
    %c0_i32_0 = arith.constant 0 : i32
    %c0_i32_1 = arith.constant 0 : i32
    return %arg0, %c0_i32, %c0_i32_0 : i32, i32, i32
  }
}

</mosaic_0001>

<llo_original>
// kernel: tpu_custom_call.1
$region0: #{tpu_custom_call.1}
  #allocation0 [shape = 'u32[]', space=smem, size = 0x4, offset = 0x4, fixed_abs, tag = 'smem constant byte address 0x4 - core index']
  #allocation1 [shape = 'u32[144,128]{1,0:T(1,128)}', space=vmem, size = 0x12000, scoped, tag = 'internal scratch']
  %s0 = inlined_call_operand.hbm [shape: f32[2,8,128], index: 0, kind: input, shape index: {}]
  %s1 = inlined_call_operand.hbm [shape: bf16[128,384], index: 1, kind: input, shape index: {}]
  %s2 = inlined_call_operand.hbm [shape: bf16[128,128], index: 2, kind: input, shape index: {}]
  %s3 = inlined_call_operand.vmem [shape: f32[1,384], index: 3, kind: input, shape index: {}]
  %s4 = inlined_call_operand.vmem [shape: f32[1,128], index: 4, kind: input, shape index: {}]
  %s5 = inlined_call_operand.hbm [shape: f32[2,8,128], index: 5, kind: output, shape index: {}]
  %s6 = sld [smem:[#allocation0]]
  $region65: #{tpu_custom_call.1} parent=0
    _
  %s8 = ssub.s32 1, %s6
  %s9 = scalar_select 0, %s8, %s6
  $region1: #{tpu_custom_call.1} parent=0
    #allocation2 [shape = 'u8[8192]{0}', space=vmem, size = 0x2000, scoped, tag = 'input window, operand 0']
    #allocation3 [shape = 's32[2]{0}', space=sflag, size = 0x8, scoped, tag = 'scoped memory for tpu_custom_call.1']
    #allocation4 [shape = 's32[2]{0}', space=sflag, size = 0x8, scoped, tag = 'scoped memory for tpu_custom_call.1']
    #allocation5 [shape = 'u8[98304]{0}', space=vmem, size = 0x18000, scoped, tag = 'input window, operand 1, single buffered']
    #allocation6 [shape = 's32[1]{0}', space=sflag, size = 0x4, scoped, tag = 'scoped memory for tpu_custom_call.1']
    #allocation7 [shape = 'u8[32768]{0}', space=vmem, size = 0x8000, scoped, tag = 'input window, operand 2, single buffered']
    #allocation8 [shape = 'u8[8192]{0}', space=vmem, size = 0x2000, scoped, tag = 'output window, operand 0']
    %10 = vsyncpa [#allocation3], 0
    %s11 = scalar_lea.sflag [#allocation3], 1
    %12 = vsyncpa %s11, 0
    %13 = vsyncpa [#allocation6], 0
    %14 = vsyncpa [#allocation4], 0
    %s15 = scalar_lea.sflag [#allocation4], 1
    %16 = vsyncpa %s15, 0
    loop: start=0, step=1, limit=4
    $region2: #{tpu_custom_call.1} parent=1 // loop_pre_header
      _
    $region3: #{tpu_custom_call.1} parent=1 // loop_header
      %s18 = sphi 0, %s22
      %p19 = scmp.ge.s32.totalorder %s18, 4
      %s28 = sphi 0, %s30
      %s31 = sphi 0, %s28
      %s32 = sphi 0, %s31
      %s48 = sphi 0, %s32
      %s52 = sphi 0, %s52
      %s54 = sphi 0, %s52
      %s55 = sphi 0, %s54
      %s69 = sphi 0, %s55
      %s73 = sphi 0, %s73
      %s75 = sphi 0, %s73
      %s76 = sphi 0, %s75
      %s90 = sphi 0, %s76
      %s94 = sphi 0, %s94
      %s96 = sphi 0, %s94
      %s97 = sphi 0, %s96
      %s111 = sphi 0, %s97
      %s115 = sphi 0, %s115
      %s117 = sphi 0, %s115
      %s118 = sphi 0, %s117
      %s132 = sphi 0, %s118
      %s138 = sphi 0, %s140
      %s141 = sphi 0, %s138
      %s142 = sphi 0, %s141
      %s158 = sphi 0, %s142
    $region4: #{tpu_custom_call.1} parent=1 // loop_header_branch
      %21 = sbr.rel (%p19) target = $region8
    $region5: #{tpu_custom_call.1} parent=1 // loop_body
      %s23 = ssub.s32 %s18, 1
      %s24 = ssub.s32 %s18, 2
      %s25 = sadd.s32 %s18, 1
      %s26 = ssub.s32 %s18, %s25
      %p27 = scmp.eq.s32.totalorder %s26, 0
      %s29 = sadd.s32 %s28, 1
      %s30 = scalar_select %p27, %s28, %s29
      %p33 = pneg %p27
      %p34 = scmp.eq.s32.totalorder %s18, 1
      %p35 = por %p33, %p34
      %p36 = scmp.ne.s32.totalorder %s28, %s31
      %p37 = scmp.eq.s32.totalorder %s18, 0
      %p38 = por %p36, %p37
      %p39 = scmp.ne.s32.totalorder %s28, %s31
      %p40 = scmp.eq.s32.totalorder %s23, 1
      %p41 = por %p39, %p40
      %p42 = scmp.ne.s32.totalorder %s31, %s32
      %p43 = scmp.eq.s32.totalorder %s23, 0
      %p44 = por %p42, %p43
      %p45 = scmp.ne.s32.totalorder %s31, %s32
      %p46 = scmp.eq.s32.totalorder %s24, 1
      %p47 = por %p45, %p46
      %p49 = scmp.ne.s32.totalorder %s32, %s48
      %p50 = scmp.eq.s32.totalorder %s24, 0
      %p51 = por %p49, %p50
      %s53 = sadd.s32 %s52, 1
      %p56 = scmp.eq.s32.totalorder %s18, 1
      %p57 = scmp.ne.s32.totalorder %s52, %s54
      %p58 = scmp.eq.s32.totalorder %s18, 0
      %p59 = por %p57, %p58
      %p60 = scmp.ne.s32.totalorder %s52, %s54
      %p61 = scmp.eq.s32.totalorder %s23, 1
      %p62 = por %p60, %p61
      %p63 = scmp.ne.s32.totalorder %s54, %s55
      %p64 = scmp.eq.s32.totalorder %s23, 0
      %p65 = por %p63, %p64
      %p66 = scmp.ne.s32.totalorder %s54, %s55
      %p67 = scmp.eq.s32.totalorder %s24, 1
      %p68 = por %p66, %p67
      %p70 = scmp.ne.s32.totalorder %s55, %s69
      %p71 = scmp.eq.s32.totalorder %s24, 0
      %p72 = por %p70, %p71
      %s74 = sadd.s32 %s73, 1
      %p77 = scmp.eq.s32.totalorder %s18, 1
      %p78 = scmp.ne.s32.totalorder %s73, %s75
      %p79 = scmp.eq.s32.totalorder %s18, 0
      %p80 = por %p78, %p79
      %p81 = scmp.ne.s32.totalorder %s73, %s75
      %p82 = scmp.eq.s32.totalorder %s23, 1
      %p83 = por %p81, %p82
      %p84 = scmp.ne.s32.totalorder %s75, %s76
      %p85 = scmp.eq.s32.totalorder %s23, 0
      %p86 = por %p84, %p85
      %p87 = scmp.ne.s32.totalorder %s75, %s76
      %p88 = scmp.eq.s32.totalorder %s24, 1
      %p89 = por %p87, %p88
      %p91 = scmp.ne.s32.totalorder %s76, %s90
      %p92 = scmp.eq.s32.totalorder %s24, 0
      %p93 = por %p91, %p92
      %s95 = sadd.s32 %s94, 1
      %p98 = scmp.eq.s32.totalorder %s18, 1
      %p99 = scmp.ne.s32.totalorder %s94, %s96
      %p100 = scmp.eq.s32.totalorder %s18, 0
      %p101 = por %p99, %p100
      %p102 = scmp.ne.s32.totalorder %s94, %s96
      %p103 = scmp.eq.s32.totalorder %s23, 1
      %p104 = por %p102, %p103
      %p105 = scmp.ne.s32.totalorder %s96, %s97
      %p106 = scmp.eq.s32.totalorder %s23, 0
      %p107 = por %p105, %p106
      %p108 = scmp.ne.s32.totalorder %s96, %s97
      %p109 = scmp.eq.s32.totalorder %s24, 1
      %p110 = por %p108, %p109
      %p112 = scmp.ne.s32.totalorder %s97, %s111
      %p113 = scmp.eq.s32.totalorder %s24, 0
      %p114 = por %p112, %p113
      %s116 = sadd.s32 %s115, 1
      %p119 = scmp.eq.s32.totalorder %s18, 1
      %p120 = scmp.ne.s32.totalorder %s115, %s117
      %p121 = scmp.eq.s32.totalorder %s18, 0
      %p122 = por %p120, %p121
      %p123 = scmp.ne.s32.totalorder %s115, %s117
      %p124 = scmp.eq.s32.totalorder %s23, 1
      %p125 = por %p123, %p124
      %p126 = scmp.ne.s32.totalorder %s117, %s118
      %p127 = scmp.eq.s32.totalorder %s23, 0
      %p128 = por %p126, %p127
      %p129 = scmp.ne.s32.totalorder %s117, %s118
      %p130 = scmp.eq.s32.totalorder %s24, 1
      %p131 = por %p129, %p130
      %p133 = scmp.ne.s32.totalorder %s118, %s132
      %p134 = scmp.eq.s32.totalorder %s24, 0
      %p135 = por %p133, %p134
      %s136 = ssub.s32 %s18, %s25
      %p137 = scmp.eq.s32.totalorder %s136, 0
      %s139 = sadd.s32 %s138, 1
      %s140 = scalar_select %p137, %s138, %s139
      %p143 = pneg %p137
      %p144 = scmp.eq.s32.totalorder %s18, 1
      %p145 = por %p143, %p144
      %p146 = scmp.ne.s32.totalorder %s138, %s141
      %p147 = scmp.eq.s32.totalorder %s18, 0
      %p148 = por %p146, %p147
      %p149 = scmp.ne.s32.totalorder %s138, %s141
      %p150 = scmp.eq.s32.totalorder %s23, 1
      %p151 = por %p149, %p150
      %p152 = scmp.ne.s32.totalorder %s141, %s142
      %p153 = scmp.eq.s32.totalorder %s23, 0
      %p154 = por %p152, %p153
      %p155 = scmp.ne.s32.totalorder %s141, %s142
      %p156 = scmp.eq.s32.totalorder %s24, 1
      %p157 = por %p155, %p156
      %p159 = scmp.ne.s32.totalorder %s142, %s158
      %p160 = scmp.eq.s32.totalorder %s24, 0
      %p161 = por %p159, %p160
      %p162 = scmp.le.s32.totalorder 1, %s18
      %p163 = scmp.lt.s32.totalorder %s18, 3
      %p164 = pnand %p162, %p163
      %p165 = pneg %p164
      // Predicated region
      $region9: #{tpu_custom_call.1} parent=5 // pred_check
        _
      $region10: #{tpu_custom_call.1} parent=5 // pred_check_branch
        %167 = sbr.rel (%p164) target = $region12
      $region11: #{tpu_custom_call.1} parent=5 // pred_region
        %s168 = ssub.s32 %s18, 1
        // Predicated region
        $region13: #{tpu_custom_call.1} parent=11 // pred_check
          %p169 = pneg %p65
        $region14: #{tpu_custom_call.1} parent=11 // pred_check_branch
          %171 = sbr.rel (%p169) target = $region16
        $region15: #{tpu_custom_call.1} parent=11 // pred_region
          %s173 = ssub.s32 3072, 3072
          %174 = vsyncadd [#allocation6], %s173
          %s175 = sshll.u32 [#allocation5], 4
          %s176 = int_to_ptr.vmem [resolvable:$true] %s175
          %181 = dma.hbm_to_vmem [thread:$0]  %s1, 3072, %s176, [#allocation6], 192, 192, 12
        $region16: #{tpu_custom_call.1} parent=11 // pred_fallthru
          _
        // Predicated region
        $region17: #{tpu_custom_call.1} parent=11 // pred_check
          %p182 = pneg %p86
        $region18: #{tpu_custom_call.1} parent=11 // pred_check_branch
          %184 = sbr.rel (%p182) target = $region20
        $region19: #{tpu_custom_call.1} parent=11 // pred_region
          %s186 = ssub.s32 1024, 1024
          %187 = vsyncadd [#allocation6], %s186
          %s188 = sshll.u32 [#allocation7], 4
          %s189 = int_to_ptr.vmem [resolvable:$true] %s188
          %194 = dma.hbm_to_vmem [thread:$0]  %s2, 1024, %s189, [#allocation6], 64, 64, 4
        $region20: #{tpu_custom_call.1} parent=11 // pred_fallthru
          _
        // Predicated region
        $region21: #{tpu_custom_call.1} parent=11 // pred_check
          %p195 = pneg %p107
        $region22: #{tpu_custom_call.1} parent=11 // pred_check_branch
          %197 = sbr.rel (%p195) target = $region24
        $region23: #{tpu_custom_call.1} parent=11 // pred_region
          _
        $region24: #{tpu_custom_call.1} parent=11 // pred_fallthru
          _
        // Predicated region
        $region25: #{tpu_custom_call.1} parent=11 // pred_check
          %p198 = pneg %p128
        $region26: #{tpu_custom_call.1} parent=11 // pred_check_branch
          %200 = sbr.rel (%p198) target = $region28
        $region27: #{tpu_custom_call.1} parent=11 // pred_region
          _
        $region28: #{tpu_custom_call.1} parent=11 // pred_fallthru
          _
      $region12: #{tpu_custom_call.1} parent=5 // pred_fallthru
        _
      %p201 = scmp.lt.s32.totalorder %s18, 2
      // Predicated region
      $region29: #{tpu_custom_call.1} parent=5 // pred_check
        %p202 = pneg %p201
      $region30: #{tpu_custom_call.1} parent=5 // pred_check_branch
        %204 = sbr.rel (%p202) target = $region32
      $region31: #{tpu_custom_call.1} parent=5 // pred_region
        // Predicated region
        $region33: #{tpu_custom_call.1} parent=31 // pred_check
          %p205 = pneg %p38
        $region34: #{tpu_custom_call.1} parent=31 // pred_check_branch
          %207 = sbr.rel (%p205) target = $region36
        $region35: #{tpu_custom_call.1} parent=31 // pred_region
          %s208 = sand.u32 %s28, 1
          %s209 = scalar_lea.sflag [#allocation3], %s208
          %s210 = sand.u32 %s28, 1
          %s211 = smul.addr %s210, 8
          %s212 = scalar_lea.vmem [#allocation2], %s211
          %s214 = ssub.s32 128, 128
          %215 = vsyncadd %s209, %s214
          %s216 = smul.addr %s18, 128
          %s217 = scalar_lea.hbm %s0, %s216
          %s219 = sshll.u32 %s212, 4
          %s220 = int_to_ptr.vmem [resolvable:$true] %s219
          %222 = dma.hbm_to_vmem [thread:$0]  %s217, 128, %s220, %s209
        $region36: #{tpu_custom_call.1} parent=31 // pred_fallthru
          _
      $region32: #{tpu_custom_call.1} parent=5 // pred_fallthru
        _
      %p223 = scmp.le.s32.totalorder 1, %s18
      %p224 = scmp.lt.s32.totalorder %s18, 3
      %p225 = pnand %p223, %p224
      %p226 = pneg %p225
      // Predicated region
      $region37: #{tpu_custom_call.1} parent=5 // pred_check
        _
      $region38: #{tpu_custom_call.1} parent=5 // pred_check_branch
        %228 = sbr.rel (%p225) target = $region40
      $region39: #{tpu_custom_call.1} parent=5 // pred_region
        %s229 = ssub.s32 %s18, 1
        %s230 = sand.u32 %s31, 1
        %s231 = scalar_lea.sflag [#allocation3], %s230
        %s232 = sand.u32 %s31, 1
        %s233 = smul.addr %s232, 8
        %s234 = scalar_lea.vmem [#allocation2], %s233
        // Predicated region
        $region41: #{tpu_custom_call.1} parent=39 // pred_check
          %p235 = pneg %p44
        $region42: #{tpu_custom_call.1} parent=39 // pred_check_branch
          %237 = sbr.rel (%p235) target = $region44
        $region43: #{tpu_custom_call.1} parent=39 // pred_region
          %238 = dma.done %s231, 128
        $region44: #{tpu_custom_call.1} parent=39 // pred_fallthru
          _
        // Predicated region
        $region45: #{tpu_custom_call.1} parent=39 // pred_check
          %p239 = pneg %p65
        $region46: #{tpu_custom_call.1} parent=39 // pred_check_branch
          %241 = sbr.rel (%p239) target = $region48
        $region47: #{tpu_custom_call.1} parent=39 // pred_region
          %242 = dma.done [#allocation6], 3072
        $region48: #{tpu_custom_call.1} parent=39 // pred_fallthru
          _
        // Predicated region
        $region49: #{tpu_custom_call.1} parent=39 // pred_check
          %p243 = pneg %p86
        $region50: #{tpu_custom_call.1} parent=39 // pred_check_branch
          %245 = sbr.rel (%p243) target = $region52
        $region51: #{tpu_custom_call.1} parent=39 // pred_region
          %246 = dma.done [#allocation6], 1024
        $region52: #{tpu_custom_call.1} parent=39 // pred_fallthru
          _
        %s247 = sand.u32 %s31, 1
        %s248 = scalar_lea.sflag [#allocation3], %s247
        %s249 = sand.u32 %s31, 1
        %s250 = smul.addr %s249, 8
        %s251 = scalar_lea.vmem [#allocation2], %s250
        %p252 = pneg %p44
        %p253 = pneg %p41
        %p254 = pneg %p65
        %p255 = pneg %p62
        %p256 = pneg %p86
        %p257 = pneg %p83
        %p258 = pneg %p107
        %p259 = pneg %p104
        %p260 = pneg %p128
        %p261 = pneg %p125
        %p262 = pneg %p154
        %p263 = pneg %p151
        %s264 = sand.u32 %s141, 1
        %s265 = scalar_lea.sflag [#allocation4], %s264
        %s266 = sand.u32 %s141, 1
        %s267 = smul.addr %s266, 8
        %s268 = scalar_lea.vmem [#allocation8], %s267
        %v270 = vld [vmem:[%s234] sm:$0xff]
        %v271 = vpack.c.bf16 %v270, %v270
        %v272 = vld [vmem:[#allocation5] sm:$0xff]
        %v273 = vld [vmem:[#allocation5 + $0x8] sm:$0xf]
        %v274 = vld [vmem:[#allocation5 + $0xc] sm:$0xff]
        %v275 = vld [vmem:[#allocation5 + $0x14] sm:$0xf]
        %v276 = vld [vmem:[#allocation5 + $0x18] sm:$0xff]
        %v277 = vld [vmem:[#allocation5 + $0x20] sm:$0xf]
        %v278 = vld [vmem:[#allocation5 + $0x24] sm:$0xff]
        %v279 = vld [vmem:[#allocation5 + $0x2c] sm:$0xf]
        %v280 = vld [vmem:[#allocation5 + $0x30] sm:$0xff]
        %v281 = vld [vmem:[#allocation5 + $0x38] sm:$0xf]
        %v282 = vld [vmem:[#allocation5 + $0x3c] sm:$0xff]
        %v283 = vld [vmem:[#allocation5 + $0x44] sm:$0xf]
        %v284 = vld [vmem:[#allocation5 + $0x48] sm:$0xff]
        %v285 = vld [vmem:[#allocation5 + $0x50] sm:$0xf]
        %v286 = vld [vmem:[#allocation5 + $0x54] sm:$0xff]
        %v287 = vld [vmem:[#allocation5 + $0x5c] sm:$0xf]
        %v288 = vld [vmem:[#allocation5 + $0x60] sm:$0xff]
        %v289 = vld [vmem:[#allocation5 + $0x68] sm:$0xf]
        %v290 = vld [vmem:[#allocation5 + $0x6c] sm:$0xff]
        %v291 = vld [vmem:[#allocation5 + $0x74] sm:$0xf]
        %v292 = vld [vmem:[#allocation5 + $0x78] sm:$0xff]
        %v293 = vld [vmem:[#allocation5 + $0x80] sm:$0xf]
        %v294 = vld [vmem:[#allocation5 + $0x84] sm:$0xff]
        %v295 = vld [vmem:[#allocation5 + $0x8c] sm:$0xf]
        %v296 = vld [vmem:[#allocation5 + $0x90] sm:$0xff]
        %v297 = vld [vmem:[#allocation5 + $0x98] sm:$0xf]
        %v298 = vld [vmem:[#allocation5 + $0x9c] sm:$0xff]
        %v299 = vld [vmem:[#allocation5 + $0xa4] sm:$0xf]
        %v300 = vld [vmem:[#allocation5 + $0xa8] sm:$0xff]
        %v301 = vld [vmem:[#allocation5 + $0xb0] sm:$0xf]
        %v302 = vld [vmem:[#allocation5 + $0xb4] sm:$0xff]
        %v303 = vld [vmem:[#allocation5 + $0xbc] sm:$0xf]
        %v304 = vld [vmem:[%s3] sm:$0x7]
        %v306 = vlaneseq
        %v307 = vshrl.u32 %v306, 7
        %v308 = vsub.s32 0, %v307
        %v309 = vrot.slane %v304, %v308
        %v310 = vlaneseq
        %v311 = vshrl.u32 %v310, 7
        %v312 = vsub.s32 1, %v311
        %v313 = vrot.slane %v304, %v312
        %v314 = vlaneseq
        %v315 = vshrl.u32 %v314, 7
        %v316 = vsub.s32 2, %v315
        %v317 = vrot.slane %v304, %v316
        %v353 = vunpack.c.l.b16 %v272
        %v354 = vunpack.c.h.b16 %v272
        %v355 = vunpack.c.l.b16 %v273
        %v356 = vunpack.c.l.b16 %v274
        %v357 = vunpack.c.h.b16 %v274
        %v358 = vunpack.c.l.b16 %v275
        %v359 = vunpack.c.l.b16 %v276
        %v360 = vunpack.c.h.b16 %v276
        %v361 = vunpack.c.l.b16 %v277
        %v362 = vunpack.c.l.b16 %v278
        %v363 = vunpack.c.h.b16 %v278
        %v364 = vunpack.c.l.b16 %v279
        %v365 = vunpack.c.l.b16 %v280
        %v366 = vunpack.c.h.b16 %v280
        %v367 = vunpack.c.l.b16 %v281
        %v368 = vunpack.c.l.b16 %v282
        %v369 = vunpack.c.h.b16 %v282
        %v370 = vunpack.c.l.b16 %v283
        %v371 = vunpack.c.l.b16 %v284
        %v372 = vunpack.c.h.b16 %v284
        %v373 = vunpack.c.l.b16 %v285
        %v374 = vunpack.c.l.b16 %v286
        %v375 = vunpack.c.h.b16 %v286
        %v376 = vunpack.c.l.b16 %v287
        %v377 = vunpack.c.l.b16 %v288
        %v378 = vunpack.c.h.b16 %v288
        %v379 = vunpack.c.l.b16 %v289
        %v380 = vunpack.c.l.b16 %v290
        %v381 = vunpack.c.h.b16 %v290
        %v382 = vunpack.c.l.b16 %v291
        %v383 = vunpack.c.l.b16 %v292
        %v384 = vunpack.c.h.b16 %v292
        %v385 = vunpack.c.l.b16 %v293
        %v386 = vunpack.c.l.b16 %v294
        %v387 = vunpack.c.h.b16 %v294
        %v388 = vunpack.c.l.b16 %v295
        %v389 = vunpack.c.l.b16 %v296
        %v390 = vunpack.c.h.b16 %v296
        %v391 = vunpack.c.l.b16 %v297
        %v392 = vunpack.c.l.b16 %v298
        %v393 = vunpack.c.h.b16 %v298
        %v394 = vunpack.c.l.b16 %v299
        %v395 = vunpack.c.l.b16 %v300
        %v396 = vunpack.c.h.b16 %v300
        %v397 = vunpack.c.l.b16 %v301
        %v398 = vunpack.c.l.b16 %v302
        %v399 = vunpack.c.h.b16 %v302
        %v400 = vunpack.c.l.b16 %v303
        %v401 = vpack.c.b16 %v356, %v353
        %v402 = vpack.c.b16 %v357, %v354
        %v403 = vpack.c.b16 %v358, %v355
        %v404 = vpack.c.b16 %v362, %v359
        %v405 = vpack.c.b16 %v363, %v360
        %v406 = vpack.c.b16 %v364, %v361
        %v407 = vpack.c.b16 %v368, %v365
        %v408 = vpack.c.b16 %v369, %v366
        %v409 = vpack.c.b16 %v370, %v367
        %v410 = vpack.c.b16 %v374, %v371
        %v411 = vpack.c.b16 %v375, %v372
        %v412 = vpack.c.b16 %v376, %v373
        %v413 = vpack.c.b16 %v380, %v377
        %v414 = vpack.c.b16 %v381, %v378
        %v415 = vpack.c.b16 %v382, %v379
        %v416 = vpack.c.b16 %v386, %v383
        %v417 = vpack.c.b16 %v387, %v384
        %v418 = vpack.c.b16 %v388, %v385
        %v419 = vpack.c.b16 %v392, %v389
        %v420 = vpack.c.b16 %v393, %v390
        %v421 = vpack.c.b16 %v394, %v391
        %v422 = vpack.c.b16 %v398, %v395
        %v423 = vpack.c.b16 %v399, %v396
        %v424 = vpack.c.b16 %v400, %v397
        %449 = vmatprep.subr.bf16.mxu0 %v402
        %450 = vmatpush1.bf16.msra.mxu0 %v401
        %451 = vmatprep.subr.bf16.mxu0 %v405
        %452 = vmatpush1.bf16.msra.mxu0 %v404
        %453 = vmatprep.subr.bf16.mxu0 %v408
        %454 = vmatpush1.bf16.msra.mxu0 %v407
        %455 = vmatprep.subr.bf16.mxu0 %v411
        %456 = vmatpush1.bf16.msra.mxu0 %v410
        %457 = vmatprep.subr.bf16.mxu0 %v414
        %458 = vmatpush1.bf16.msra.mxu0 %v413
        %459 = vmatprep.subr.bf16.mxu0 %v417
        %460 = vmatpush1.bf16.msra.mxu0 %v416
        %461 = vmatprep.subr.bf16.mxu0 %v420
        %462 = vmatpush1.bf16.msra.mxu0 %v419
        %463 = vmatprep.subr.bf16.mxu0 %v423
        %464 = vmatpush1.bf16.msra.mxu0 %v422
        %465 = vmatprep.subr.bf16.mxu0 0
        %466 = vmatpush1.bf16.msra.mxu0 0
        %467 = vmatprep.subr.bf16.mxu0 0
        %468 = vmatpush1.bf16.msra.mxu0 0
        %469 = vmatprep.subr.bf16.mxu0 0
        %470 = vmatpush1.bf16.msra.mxu0 0
        %471 = vmatprep.subr.bf16.mxu0 0
        %472 = vmatpush1.bf16.msra.mxu0 0
        %473 = vmatprep.subr.bf16.mxu0 0
        %474 = vmatpush1.bf16.msra.mxu0 0
        %475 = vmatprep.subr.bf16.mxu0 0
        %476 = vmatpush1.bf16.msra.mxu0 0
        %477 = vmatprep.subr.bf16.mxu0 0
        %478 = vmatpush1.bf16.msra.mxu0 0
        %479 = vmatprep.subr.bf16.mxu0 0
        %480 = vmatpush1.bf16.msra.mxu0 0
        %481 = vmatprep.mubr.bf16.mxu0 0
        %482 = vmatmul.mubr.bf16.gmra.mrb[0].mxu0 %v271
        %v483 = vpop.f32.mrb[0].mxu0
        %v484 = vadd.f32 %v309, %v483
        %v485 = vpop.f32.mrb[0].mxu0
        %v486 = vadd.f32 %v313, %v485
        %v487 = vpop.f32.mrb[0].mxu0
        %v488 = vpop.f32.mrb[0].mxu0
        %489 = vdwg.mxu0
        %490 = vmatprep.subr.bf16.mxu0 0
        %491 = vmatpush1.bf16.msra.mxu0 %v403
        %492 = vmatprep.subr.bf16.mxu0 0
        %493 = vmatpush1.bf16.msra.mxu0 %v406
        %494 = vmatprep.subr.bf16.mxu0 0
        %495 = vmatpush1.bf16.msra.mxu0 %v409
        %496 = vmatprep.subr.bf16.mxu0 0
        %497 = vmatpush1.bf16.msra.mxu0 %v412
        %498 = vmatprep.subr.bf16.mxu0 0
        %499 = vmatpush1.bf16.msra.mxu0 %v415
        %500 = vmatprep.subr.bf16.mxu0 0
        %501 = vmatpush1.bf16.msra.mxu0 %v418
        %502 = vmatprep.subr.bf16.mxu0 0
        %503 = vmatpush1.bf16.msra.mxu0 %v421
        %504 = vmatprep.subr.bf16.mxu0 0
        %505 = vmatpush1.bf16.msra.mxu0 %v424
        %506 = vmatprep.subr.bf16.mxu0 0
        %507 = vmatpush1.bf16.msra.mxu0 0
        %508 = vmatprep.subr.bf16.mxu0 0
        %509 = vmatpush1.bf16.msra.mxu0 0
        %510 = vmatprep.subr.bf16.mxu0 0
        %511 = vmatpush1.bf16.msra.mxu0 0
        %512 = vmatprep.subr.bf16.mxu0 0
        %513 = vmatpush1.bf16.msra.mxu0 0
        %514 = vmatprep.subr.bf16.mxu0 0
        %515 = vmatpush1.bf16.msra.mxu0 0
        %516 = vmatprep.subr.bf16.mxu0 0
        %517 = vmatpush1.bf16.msra.mxu0 0
        %518 = vmatprep.subr.bf16.mxu0 0
        %519 = vmatpush1.bf16.msra.mxu0 0
        %520 = vmatprep.subr.bf16.mxu0 0
        %521 = vmatpush1.bf16.msra.mxu0 0
        %522 = vmatprep.mubr.bf16.mxu0 0
        %523 = vmatmul.mubr.bf16.gmra.mrb[0].mxu0 %v271
        %v524 = vpop.f32.mrb[0].mxu0
        %v525 = vadd.f32 %v317, %v524
        %v526 = vpop.f32.mrb[0].mxu0
        %v527 = vpop.f32.mrb[0].mxu0
        %v528 = vpop.f32.mrb[0].mxu0
        %529 = vdwg.mxu0
        %v530 = vpack.c.bf16 %v484, %v484
        %v531 = vpack.c.bf16 %v486, %v486
        %v532 = vpack.c.bf16 %v525, %v525
        %vm533 = vcmask 261120
        %v535 = vsel %vm533, %v530, 0
        %v538 = vsel %vm533, %v531, 0
        %540 = vmatprep.subr.bf16.mxu0 0
        %541 = vmatpush1.bf16.xpose.msra.mxu0 %v538
        %542 = vmatprep.subr.bf16.mxu0 0
        %543 = vmatpush1.bf16.xpose.msra.mxu0 0
        %544 = vmatprep.subr.bf16.mxu0 0
        %545 = vmatpush1.bf16.xpose.msra.mxu0 0
        %546 = vmatprep.subr.bf16.mxu0 0
        %547 = vmatpush1.bf16.xpose.msra.mxu0 0
        %548 = vmatprep.subr.bf16.mxu0 0
        %549 = vmatpush1.bf16.xpose.msra.mxu0 0
        %550 = vmatprep.subr.bf16.mxu0 0
        %551 = vmatpush1.bf16.xpose.msra.mxu0 0
        %552 = vmatprep.subr.bf16.mxu0 0
        %553 = vmatpush1.bf16.xpose.msra.mxu0 0
        %554 = vmatprep.subr.bf16.mxu0 0
        %555 = vmatpush1.bf16.xpose.msra.mxu0 0
        %556 = vmatprep.subr.bf16.mxu0 0
        %557 = vmatpush1.bf16.xpose.msra.mxu0 0
        %558 = vmatprep.subr.bf16.mxu0 0
        %559 = vmatpush1.bf16.xpose.msra.mxu0 0
        %560 = vmatprep.subr.bf16.mxu0 0
        %561 = vmatpush1.bf16.xpose.msra.mxu0 0
        %562 = vmatprep.subr.bf16.mxu0 0
        %563 = vmatpush1.bf16.xpose.msra.mxu0 0
        %564 = vmatprep.subr.bf16.mxu0 0
        %565 = vmatpush1.bf16.xpose.msra.mxu0 0
        %566 = vmatprep.subr.bf16.mxu0 0
        %567 = vmatpush1.bf16.xpose.msra.mxu0 0
        %568 = vmatprep.subr.bf16.mxu0 0
        %569 = vmatpush1.bf16.xpose.msra.mxu0 0
        %570 = vmatprep.subr.bf16.mxu0 0
        %571 = vmatpush1.bf16.xpose.msra.mxu0 0
        %572 = vmatprep.mubr.bf16.mxu0 0
        %573 = vmatmul.mubr.bf16.gmra.mrb[0].mxu0 %v535
        %v574 = vpop.f32.mrb[0].mxu0
        %v575 = vadd.f32 0.0, %v574
        %v576 = vpop.f32.mrb[0].mxu0
        %v577 = vpop.f32.mrb[0].mxu0
        %v578 = vpop.f32.mrb[0].mxu0
        %579 = vdwg.mxu0
        %581 = vrot.lane.b32.xlu0 %v530, 96
        %v582 = vpop.permute.xlu0 %581
        %584 = vrot.lane.b32.xlu0 %v531, 96
        %v585 = vpop.permute.xlu0 %584
        %v587 = vsel %vm533, %v582, 0
        %v590 = vsel %vm533, %v585, 0
        %592 = vmatprep.subr.bf16.mxu0 0
        %593 = vmatpush1.bf16.xpose.msra.mxu0 %v590
        %594 = vmatprep.subr.bf16.mxu0 0
        %595 = vmatpush1.bf16.xpose.msra.mxu0 0
        %596 = vmatprep.subr.bf16.mxu0 0
        %597 = vmatpush1.bf16.xpose.msra.mxu0 0
        %598 = vmatprep.subr.bf16.mxu0 0
        %599 = vmatpush1.bf16.xpose.msra.mxu0 0
        %600 = vmatprep.subr.bf16.mxu0 0
        %601 = vmatpush1.bf16.xpose.msra.mxu0 0
        %602 = vmatprep.subr.bf16.mxu0 0
        %603 = vmatpush1.bf16.xpose.msra.mxu0 0
        %604 = vmatprep.subr.bf16.mxu0 0
        %605 = vmatpush1.bf16.xpose.msra.mxu0 0
        %606 = vmatprep.subr.bf16.mxu0 0
        %607 = vmatpush1.bf16.xpose.msra.mxu0 0
        %608 = vmatprep.subr.bf16.mxu0 0
        %609 = vmatpush1.bf16.xpose.msra.mxu0 0
        %610 = vmatprep.subr.bf16.mxu0 0
        %611 = vmatpush1.bf16.xpose.msra.mxu0 0
        %612 = vmatprep.subr.bf16.mxu0 0
        %613 = vmatpush1.bf16.xpose.msra.mxu0 0
        %614 = vmatprep.subr.bf16.mxu0 0
        %615 = vmatpush1.bf16.xpose.msra.mxu0 0
        %616 = vmatprep.subr.bf16.mxu0 0
        %617 = vmatpush1.bf16.xpose.msra.mxu0 0
        %618 = vmatprep.subr.bf16.mxu0 0
        %619 = vmatpush1.bf16.xpose.msra.mxu0 0
        %620 = vmatprep.subr.bf16.mxu0 0
        %621 = vmatpush1.bf16.xpose.msra.mxu0 0
        %622 = vmatprep.subr.bf16.mxu0 0
        %623 = vmatpush1.bf16.xpose.msra.mxu0 0
        %624 = vmatprep.mubr.bf16.mxu0 0
        %625 = vmatmul.mubr.bf16.gmra.mrb[0].mxu0 %v587
        %v626 = vpop.f32.mrb[0].mxu0
        %v627 = vadd.f32 0.0, %v626
        %v628 = vpop.f32.mrb[0].mxu0
        %v629 = vpop.f32.mrb[0].mxu0
        %v630 = vpop.f32.mrb[0].mxu0
        %631 = vdwg.mxu0
        %632 = vrot.lane.b32.xlu0 %v530, 64
        %v633 = vpop.permute.xlu0 %632
        %634 = vrot.lane.b32.xlu0 %v531, 64
        %v635 = vpop.permute.xlu0 %634
        %v637 = vsel %vm533, %v633, 0
        %v640 = vsel %vm533, %v635, 0
        %642 = vmatprep.subr.bf16.mxu0 0
        %643 = vmatpush1.bf16.xpose.msra.mxu0 %v640
        %644 = vmatprep.subr.bf16.mxu0 0
        %645 = vmatpush1.bf16.xpose.msra.mxu0 0
        %646 = vmatprep.subr.bf16.mxu0 0
        %647 = vmatpush1.bf16.xpose.msra.mxu0 0
        %648 = vmatprep.subr.bf16.mxu0 0
        %649 = vmatpush1.bf16.xpose.msra.mxu0 0
        %650 = vmatprep.subr.bf16.mxu0 0
        %651 = vmatpush1.bf16.xpose.msra.mxu0 0
        %652 = vmatprep.subr.bf16.mxu0 0
        %653 = vmatpush1.bf16.xpose.msra.mxu0 0
        %654 = vmatprep.subr.bf16.mxu0 0
        %655 = vmatpush1.bf16.xpose.msra.mxu0 0
        %656 = vmatprep.subr.bf16.mxu0 0
        %657 = vmatpush1.bf16.xpose.msra.mxu0 0
        %658 = vmatprep.subr.bf16.mxu0 0
        %659 = vmatpush1.bf16.xpose.msra.mxu0 0
        %660 = vmatprep.subr.bf16.mxu0 0
        %661 = vmatpush1.bf16.xpose.msra.mxu0 0
        %662 = vmatprep.subr.bf16.mxu0 0
        %663 = vmatpush1.bf16.xpose.msra.mxu0 0
        %664 = vmatprep.subr.bf16.mxu0 0
        %665 = vmatpush1.bf16.xpose.msra.mxu0 0
        %666 = vmatprep.subr.bf16.mxu0 0
        %667 = vmatpush1.bf16.xpose.msra.mxu0 0
        %668 = vmatprep.subr.bf16.mxu0 0
        %669 = vmatpush1.bf16.xpose.msra.mxu0 0
        %670 = vmatprep.subr.bf16.mxu0 0
        %671 = vmatpush1.bf16.xpose.msra.mxu0 0
        %672 = vmatprep.subr.bf16.mxu0 0
        %673 = vmatpush1.bf16.xpose.msra.mxu0 0
        %674 = vmatprep.mubr.bf16.mxu0 0
        %675 = vmatmul.mubr.bf16.gmra.mrb[0].mxu0 %v637
        %v676 = vpop.f32.mrb[0].mxu0
        %v677 = vadd.f32 0.0, %v676
        %v678 = vpop.f32.mrb[0].mxu0
        %v679 = vpop.f32.mrb[0].mxu0
        %v680 = vpop.f32.mrb[0].mxu0
        %681 = vdwg.mxu0
        %682 = vrot.lane.b32.xlu0 %v530, 32
        %v683 = vpop.permute.xlu0 %682
        %684 = vrot.lane.b32.xlu0 %v531, 32
        %v685 = vpop.permute.xlu0 %684
        %v687 = vsel %vm533, %v683, 0
        %v690 = vsel %vm533, %v685, 0
        %692 = vmatprep.subr.bf16.mxu0 0
        %693 = vmatpush1.bf16.xpose.msra.mxu0 %v690
        %694 = vmatprep.subr.bf16.mxu0 0
        %695 = vmatpush1.bf16.xpose.msra.mxu0 0
        %696 = vmatprep.subr.bf16.mxu0 0
        %697 = vmatpush1.bf16.xpose.msra.mxu0 0
        %698 = vmatprep.subr.bf16.mxu0 0
        %699 = vmatpush1.bf16.xpose.msra.mxu0 0
        %700 = vmatprep.subr.bf16.mxu0 0
        %701 = vmatpush1.bf16.xpose.msra.mxu0 0
        %702 = vmatprep.subr.bf16.mxu0 0
        %703 = vmatpush1.bf16.xpose.msra.mxu0 0
        %704 = vmatprep.subr.bf16.mxu0 0
        %705 = vmatpush1.bf16.xpose.msra.mxu0 0
        %706 = vmatprep.subr.bf16.mxu0 0
        %707 = vmatpush1.bf16.xpose.msra.mxu0 0
        %708 = vmatprep.subr.bf16.mxu0 0
        %709 = vmatpush1.bf16.xpose.msra.mxu0 0
        %710 = vmatprep.subr.bf16.mxu0 0
        %711 = vmatpush1.bf16.xpose.msra.mxu0 0
        %712 = vmatprep.subr.bf16.mxu0 0
        %713 = vmatpush1.bf16.xpose.msra.mxu0 0
        %714 = vmatprep.subr.bf16.mxu0 0
        %715 = vmatpush1.bf16.xpose.msra.mxu0 0
        %716 = vmatprep.subr.bf16.mxu0 0
        %717 = vmatpush1.bf16.xpose.msra.mxu0 0
        %718 = vmatprep.subr.bf16.mxu0 0
        %719 = vmatpush1.bf16.xpose.msra.mxu0 0
        %720 = vmatprep.subr.bf16.mxu0 0
        %721 = vmatpush1.bf16.xpose.msra.mxu0 0
        %722 = vmatprep.subr.bf16.mxu0 0
        %723 = vmatpush1.bf16.xpose.msra.mxu0 0
        %724 = vmatprep.mubr.bf16.mxu0 0
        %725 = vmatmul.mubr.bf16.gmra.mrb[0].mxu0 %v687
        %v726 = vpop.f32.mrb[0].mxu0
        %v727 = vadd.f32 0.0, %v726
        %v728 = vpop.f32.mrb[0].mxu0
        %v729 = vpop.f32.mrb[0].mxu0
        %v730 = vpop.f32.mrb[0].mxu0
        %731 = vdwg.mxu0
        %v732 = vmul.f32 %v575, 0.17677669
        %v733 = vmul.f32 %v627, 0.17677669
        %v734 = vmul.f32 %v677, 0.17677669
        %v735 = vmul.f32 %v727, 0.17677669
        %vm736 = vcmask 64512
        %v737 = vsel %vm736, %v732, -inf
        %738 = vmax.xlane.f32.xlu0 %v737
        %v739 = vpop.xlane.xlu0 %738
        %v740 = vsel %vm736, %v733, -inf
        %741 = vmax.xlane.f32.xlu0 %v740
        %v742 = vpop.xlane.xlu0 %741
        %v743 = vsel %vm736, %v734, -inf
        %744 = vmax.xlane.f32.xlu0 %v743
        %v745 = vpop.xlane.xlu0 %744
        %v746 = vsel %vm736, %v735, -inf
        %747 = vmax.xlane.f32.xlu0 %v746
        %v748 = vpop.xlane.xlu0 %747
        %v749 = vsub.f32 %v732, %v739
        %v750 = vsub.f32 %v733, %v742
        %v751 = vsub.f32 %v734, %v745
        %v752 = vsub.f32 %v735, %v748
        %v753 = vmul.f32 %v749, 1.442695
        %v754 = vpow.pop %v753
        %v755 = vmul.f32 %v750, 1.442695
        %v756 = vpow.pop %v755
        %v757 = vmul.f32 %v751, 1.442695
        %v758 = vpow.pop %v757
        %v759 = vmul.f32 %v752, 1.442695
        %v760 = vpow.pop %v759
        %v761 = vsel %vm736, %v754, 0.0
        %762 = vadd.xlane.f32.xlu0 %v761
        %v763 = vpop.xlane.xlu0 %762
        %v764 = vsel %vm736, %v756, 0.0
        %765 = vadd.xlane.f32.xlu0 %v764
        %v766 = vpop.xlane.xlu0 %765
        %v767 = vsel %vm736, %v758, 0.0
        %768 = vadd.xlane.f32.xlu0 %v767
        %v769 = vpop.xlane.xlu0 %768
        %v770 = vsel %vm736, %v760, 0.0
        %771 = vadd.xlane.f32.xlu0 %v770
        %v772 = vpop.xlane.xlu0 %771
        %v773 = vrcp.pop %v763
        %v774 = vrcp.pop %v766
        %v775 = vrcp.pop %v769
        %v776 = vrcp.pop %v772
        %v777 = vmul.f32 %v754, %v773
        %v778 = vmul.f32 %v756, %v774
        %v779 = vmul.f32 %v758, %v775
        %v780 = vmul.f32 %v760, %v776
        %v781 = vpack.c.bf16 %v777, %v777
        %v782 = vpack.c.bf16 %v778, %v778
        %v783 = vpack.c.bf16 %v779, %v779
        %v784 = vpack.c.bf16 %v780, %v780
        %v786 = vsel %vm736, %v781, 0
        %vm788 = vcmask 1043456
        %v790 = vsel %vm788, %v532, 0
        %792 = vmatprep.subr.bf16.mxu0 0
        %793 = vmatpush1.bf16.msra.mxu0 %v790
        %794 = vmatprep.subr.bf16.mxu0 0
        %795 = vmatpush1.bf16.msra.mxu0 0
        %796 = vmatprep.subr.bf16.mxu0 0
        %797 = vmatpush1.bf16.msra.mxu0 0
        %798 = vmatprep.subr.bf16.mxu0 0
        %799 = vmatpush1.bf16.msra.mxu0 0
        %800 = vmatprep.subr.bf16.mxu0 0
        %801 = vmatpush1.bf16.msra.mxu0 0
        %802 = vmatprep.subr.bf16.mxu0 0
        %803 = vmatpush1.bf16.msra.mxu0 0
        %804 = vmatprep.subr.bf16.mxu0 0
        %805 = vmatpush1.bf16.msra.mxu0 0
        %806 = vmatprep.subr.bf16.mxu0 0
        %807 = vmatpush1.bf16.msra.mxu0 0
        %808 = vmatprep.subr.bf16.mxu0 0
        %809 = vmatpush1.bf16.msra.mxu0 0
        %810 = vmatprep.subr.bf16.mxu0 0
        %811 = vmatpush1.bf16.msra.mxu0 0
        %812 = vmatprep.subr.bf16.mxu0 0
        %813 = vmatpush1.bf16.msra.mxu0 0
        %814 = vmatprep.subr.bf16.mxu0 0
        %815 = vmatpush1.bf16.msra.mxu0 0
        %816 = vmatprep.subr.bf16.mxu0 0
        %817 = vmatpush1.bf16.msra.mxu0 0
        %818 = vmatprep.subr.bf16.mxu0 0
        %819 = vmatpush1.bf16.msra.mxu0 0
        %820 = vmatprep.subr.bf16.mxu0 0
        %821 = vmatpush1.bf16.msra.mxu0 0
        %822 = vmatprep.subr.bf16.mxu0 0
        %823 = vmatpush1.bf16.msra.mxu0 0
        %824 = vmatprep.mubr.bf16.mxu0 0
        %825 = vmatmul.mubr.bf16.gmra.mrb[0].mxu0 %v786
        %v826 = vpop.f32.mrb[0].mxu0
        %v827 = vadd.f32 0.0, %v826
        %v828 = vpop.f32.mrb[0].mxu0
        %v829 = vpop.f32.mrb[0].mxu0
        %v830 = vpop.f32.mrb[0].mxu0
        %831 = vdwg.mxu0
        %v832 = vpack.c.bf16 %v827, %v827
        %834 = vrot.lane.b32.xlu0 %v532, 96
        %v835 = vpop.permute.xlu0 %834
        %v837 = vsel %vm736, %v782, 0
        %v840 = vsel %vm788, %v835, 0
        %842 = vmatprep.subr.bf16.mxu0 0
        %843 = vmatpush1.bf16.msra.mxu0 %v840
        %844 = vmatprep.subr.bf16.mxu0 0
        %845 = vmatpush1.bf16.msra.mxu0 0
        %846 = vmatprep.subr.bf16.mxu0 0
        %847 = vmatpush1.bf16.msra.mxu0 0
        %848 = vmatprep.subr.bf16.mxu0 0
        %849 = vmatpush1.bf16.msra.mxu0 0
        %850 = vmatprep.subr.bf16.mxu0 0
        %851 = vmatpush1.bf16.msra.mxu0 0
        %852 = vmatprep.subr.bf16.mxu0 0
        %853 = vmatpush1.bf16.msra.mxu0 0
        %854 = vmatprep.subr.bf16.mxu0 0
        %855 = vmatpush1.bf16.msra.mxu0 0
        %856 = vmatprep.subr.bf16.mxu0 0
        %857 = vmatpush1.bf16.msra.mxu0 0
        %858 = vmatprep.subr.bf16.mxu0 0
        %859 = vmatpush1.bf16.msra.mxu0 0
        %860 = vmatprep.subr.bf16.mxu0 0
        %861 = vmatpush1.bf16.msra.mxu0 0
        %862 = vmatprep.subr.bf16.mxu0 0
        %863 = vmatpush1.bf16.msra.mxu0 0
        %864 = vmatprep.subr.bf16.mxu0 0
        %865 = vmatpush1.bf16.msra.mxu0 0
        %866 = vmatprep.subr.bf16.mxu0 0
        %867 = vmatpush1.bf16.msra.mxu0 0
        %868 = vmatprep.subr.bf16.mxu0 0
        %869 = vmatpush1.bf16.msra.mxu0 0
        %870 = vmatprep.subr.bf16.mxu0 0
        %871 = vmatpush1.bf16.msra.mxu0 0
        %872 = vmatprep.subr.bf16.mxu0 0
        %873 = vmatpush1.bf16.msra.mxu0 0
        %874 = vmatprep.mubr.bf16.mxu0 0
        %875 = vmatmul.mubr.bf16.gmra.mrb[0].mxu0 %v837
        %v876 = vpop.f32.mrb[0].mxu0
        %v877 = vadd.f32 0.0, %v876
        %v878 = vpop.f32.mrb[0].mxu0
        %v879 = vpop.f32.mrb[0].mxu0
        %v880 = vpop.f32.mrb[0].mxu0
        %881 = vdwg.mxu0
        %v882 = vpack.c.bf16 %v877, %v877
        %883 = vrot.lane.b32.xlu0 %v532, 64
        %v884 = vpop.permute.xlu0 %883
        %v886 = vsel %vm736, %v783, 0
        %v889 = vsel %vm788, %v884, 0
        %891 = vmatprep.subr.bf16.mxu0 0
        %892 = vmatpush1.bf16.msra.mxu0 %v889
        %893 = vmatprep.subr.bf16.mxu0 0
        %894 = vmatpush1.bf16.msra.mxu0 0
        %895 = vmatprep.subr.bf16.mxu0 0
        %896 = vmatpush1.bf16.msra.mxu0 0
        %897 = vmatprep.subr.bf16.mxu0 0
        %898 = vmatpush1.bf16.msra.mxu0 0
        %899 = vmatprep.subr.bf16.mxu0 0
        %900 = vmatpush1.bf16.msra.mxu0 0
        %901 = vmatprep.subr.bf16.mxu0 0
        %902 = vmatpush1.bf16.msra.mxu0 0
        %903 = vmatprep.subr.bf16.mxu0 0
        %904 = vmatpush1.bf16.msra.mxu0 0
        %905 = vmatprep.subr.bf16.mxu0 0
        %906 = vmatpush1.bf16.msra.mxu0 0
        %907 = vmatprep.subr.bf16.mxu0 0
        %908 = vmatpush1.bf16.msra.mxu0 0
        %909 = vmatprep.subr.bf16.mxu0 0
        %910 = vmatpush1.bf16.msra.mxu0 0
        %911 = vmatprep.subr.bf16.mxu0 0
        %912 = vmatpush1.bf16.msra.mxu0 0
        %913 = vmatprep.subr.bf16.mxu0 0
        %914 = vmatpush1.bf16.msra.mxu0 0
        %915 = vmatprep.subr.bf16.mxu0 0
        %916 = vmatpush1.bf16.msra.mxu0 0
        %917 = vmatprep.subr.bf16.mxu0 0
        %918 = vmatpush1.bf16.msra.mxu0 0
        %919 = vmatprep.subr.bf16.mxu0 0
        %920 = vmatpush1.bf16.msra.mxu0 0
        %921 = vmatprep.subr.bf16.mxu0 0
        %922 = vmatpush1.bf16.msra.mxu0 0
        %923 = vmatprep.mubr.bf16.mxu0 0
        %924 = vmatmul.mubr.bf16.gmra.mrb[0].mxu0 %v886
        %v925 = vpop.f32.mrb[0].mxu0
        %v926 = vadd.f32 0.0, %v925
        %v927 = vpop.f32.mrb[0].mxu0
        %v928 = vpop.f32.mrb[0].mxu0
        %v929 = vpop.f32.mrb[0].mxu0
        %930 = vdwg.mxu0
        %v931 = vpack.c.bf16 %v926, %v926
        %932 = vrot.lane.b32.xlu0 %v532, 32
        %v933 = vpop.permute.xlu0 %932
        %v935 = vsel %vm736, %v784, 0
        %v938 = vsel %vm788, %v933, 0
        %940 = vmatprep.subr.bf16.mxu0 0
        %941 = vmatpush1.bf16.msra.mxu0 %v938
        %942 = vmatprep.subr.bf16.mxu0 0
        %943 = vmatpush1.bf16.msra.mxu0 0
        %944 = vmatprep.subr.bf16.mxu0 0
        %945 = vmatpush1.bf16.msra.mxu0 0
        %946 = vmatprep.subr.bf16.mxu0 0
        %947 = vmatpush1.bf16.msra.mxu0 0
        %948 = vmatprep.subr.bf16.mxu0 0
        %949 = vmatpush1.bf16.msra.mxu0 0
        %950 = vmatprep.subr.bf16.mxu0 0
        %951 = vmatpush1.bf16.msra.mxu0 0
        %952 = vmatprep.subr.bf16.mxu0 0
        %953 = vmatpush1.bf16.msra.mxu0 0
        %954 = vmatprep.subr.bf16.mxu0 0
        %955 = vmatpush1.bf16.msra.mxu0 0
        %956 = vmatprep.subr.bf16.mxu0 0
        %957 = vmatpush1.bf16.msra.mxu0 0
        %958 = vmatprep.subr.bf16.mxu0 0
        %959 = vmatpush1.bf16.msra.mxu0 0
        %960 = vmatprep.subr.bf16.mxu0 0
        %961 = vmatpush1.bf16.msra.mxu0 0
        %962 = vmatprep.subr.bf16.mxu0 0
        %963 = vmatpush1.bf16.msra.mxu0 0
        %964 = vmatprep.subr.bf16.mxu0 0
        %965 = vmatpush1.bf16.msra.mxu0 0
        %966 = vmatprep.subr.bf16.mxu0 0
        %967 = vmatpush1.bf16.msra.mxu0 0
        %968 = vmatprep.subr.bf16.mxu0 0
        %969 = vmatpush1.bf16.msra.mxu0 0
        %970 = vmatprep.subr.bf16.mxu0 0
        %971 = vmatpush1.bf16.msra.mxu0 0
        %972 = vmatprep.mubr.bf16.mxu0 0
        %973 = vmatmul.mubr.bf16.gmra.mrb[0].mxu0 %v935
        %v974 = vpop.f32.mrb[0].mxu0
        %v975 = vadd.f32 0.0, %v974
        %v976 = vpop.f32.mrb[0].mxu0
        %v977 = vpop.f32.mrb[0].mxu0
        %v978 = vpop.f32.mrb[0].mxu0
        %979 = vdwg.mxu0
        %v980 = vpack.c.bf16 %v975, %v975
        %982 = vrot.lane.b32.xlu0 %v882, 32
        %v983 = vpop.permute.xlu0 %982
        %985 = vrot.lane.b32.xlu0 %v931, 64
        %v986 = vpop.permute.xlu0 %985
        %988 = vrot.lane.b32.xlu0 %v980, 96
        %v989 = vpop.permute.xlu0 %988
        %v992 = vsel %vm533, %v832, %v983
        %vm993 = vcmask 523264
        %v995 = vsel %vm993, %v992, %v986
        %vm996 = vcmask 785408
        %v998 = vsel %vm996, %v995, %v989
        %v1000 = vld [vmem:[#allocation7] sm:$0xf]
        %v1001 = vld [vmem:[#allocation7 + $0x4] sm:$0xf]
        %v1002 = vld [vmem:[#allocation7 + $0x8] sm:$0xf]
        %v1003 = vld [vmem:[#allocation7 + $0xc] sm:$0xf]
        %v1004 = vld [vmem:[#allocation7 + $0x10] sm:$0xf]
        %v1005 = vld [vmem:[#allocation7 + $0x14] sm:$0xf]
        %v1006 = vld [vmem:[#allocation7 + $0x18] sm:$0xf]
        %v1007 = vld [vmem:[#allocation7 + $0x1c] sm:$0xf]
        %v1008 = vld [vmem:[#allocation7 + $0x20] sm:$0xf]
        %v1009 = vld [vmem:[#allocation7 + $0x24] sm:$0xf]
        %v1010 = vld [vmem:[#allocation7 + $0x28] sm:$0xf]
        %v1011 = vld [vmem:[#allocation7 + $0x2c] sm:$0xf]
        %v1012 = vld [vmem:[#allocation7 + $0x30] sm:$0xf]
        %v1013 = vld [vmem:[#allocation7 + $0x34] sm:$0xf]
        %v1014 = vld [vmem:[#allocation7 + $0x38] sm:$0xf]
        %v1015 = vld [vmem:[#allocation7 + $0x3c] sm:$0xf]
        %v1016 = vld [vmem:[%s4] sm:$0x1]
        %v1018 = vlaneseq
        %v1019 = vshrl.u32 %v1018, 7
        %v1020 = vsub.s32 0, %v1019
        %v1021 = vrot.slane %v1016, %v1020
        %v1039 = vunpack.c.l.b16 %v1000
        %v1040 = vunpack.c.l.b16 %v1001
        %v1041 = vunpack.c.l.b16 %v1002
        %v1042 = vunpack.c.l.b16 %v1003
        %v1043 = vunpack.c.l.b16 %v1004
        %v1044 = vunpack.c.l.b16 %v1005
        %v1045 = vunpack.c.l.b16 %v1006
        %v1046 = vunpack.c.l.b16 %v1007
        %v1047 = vunpack.c.l.b16 %v1008
        %v1048 = vunpack.c.l.b16 %v1009
        %v1049 = vunpack.c.l.b16 %v1010
        %v1050 = vunpack.c.l.b16 %v1011
        %v1051 = vunpack.c.l.b16 %v1012
        %v1052 = vunpack.c.l.b16 %v1013
        %v1053 = vunpack.c.l.b16 %v1014
        %v1054 = vunpack.c.l.b16 %v1015
        %v1055 = vpack.c.b16 %v1040, %v1039
        %v1056 = vpack.c.b16 %v1042, %v1041
        %v1057 = vpack.c.b16 %v1044, %v1043
        %v1058 = vpack.c.b16 %v1046, %v1045
        %v1059 = vpack.c.b16 %v1048, %v1047
        %v1060 = vpack.c.b16 %v1050, %v1049
        %v1061 = vpack.c.b16 %v1052, %v1051
        %v1062 = vpack.c.b16 %v1054, %v1053
        %1071 = vmatprep.subr.bf16.mxu0 0
        %1072 = vmatpush1.bf16.msra.mxu0 %v1055
        %1073 = vmatprep.subr.bf16.mxu0 0
        %1074 = vmatpush1.bf16.msra.mxu0 %v1056
        %1075 = vmatprep.subr.bf16.mxu0 0
        %1076 = vmatpush1.bf16.msra.mxu0 %v1057
        %1077 = vmatprep.subr.bf16.mxu0 0
        %1078 = vmatpush1.bf16.msra.mxu0 %v1058
        %1079 = vmatprep.subr.bf16.mxu0 0
        %1080 = vmatpush1.bf16.msra.mxu0 %v1059
        %1081 = vmatprep.subr.bf16.mxu0 0
        %1082 = vmatpush1.bf16.msra.mxu0 %v1060
        %1083 = vmatprep.subr.bf16.mxu0 0
        %1084 = vmatpush1.bf16.msra.mxu0 %v1061
        %1085 = vmatprep.subr.bf16.mxu0 0
        %1086 = vmatpush1.bf16.msra.mxu0 %v1062
        %1087 = vmatprep.subr.bf16.mxu0 0
        %1088 = vmatpush1.bf16.msra.mxu0 0
        %1089 = vmatprep.subr.bf16.mxu0 0
        %1090 = vmatpush1.bf16.msra.mxu0 0
        %1091 = vmatprep.subr.bf16.mxu0 0
        %1092 = vmatpush1.bf16.msra.mxu0 0
        %1093 = vmatprep.subr.bf16.mxu0 0
        %1094 = vmatpush1.bf16.msra.mxu0 0
        %1095 = vmatprep.subr.bf16.mxu0 0
        %1096 = vmatpush1.bf16.msra.mxu0 0
        %1097 = vmatprep.subr.bf16.mxu0 0
        %1098 = vmatpush1.bf16.msra.mxu0 0
        %1099 = vmatprep.subr.bf16.mxu0 0
        %1100 = vmatpush1.bf16.msra.mxu0 0
        %1101 = vmatprep.subr.bf16.mxu0 0
        %1102 = vmatpush1.bf16.msra.mxu0 0
        %1103 = vmatprep.mubr.bf16.mxu0 0
        %1104 = vmatmul.mubr.bf16.gmra.mrb[0].mxu0 %v998
        %v1105 = vpop.f32.mrb[0].mxu0
        %v1106 = vadd.f32 %v1021, %v1105
        %v1107 = vpop.f32.mrb[0].mxu0
        %v1108 = vpop.f32.mrb[0].mxu0
        %v1109 = vpop.f32.mrb[0].mxu0
        %1110 = vdwg.mxu0
        %1111 = vst [vmem:[%s268] sm:$0xff] %v1106
        %s1112 = sand.u32 %s141, 1
        %s1113 = scalar_lea.sflag [#allocation4], %s1112
        %s1114 = sand.u32 %s141, 1
        %s1115 = smul.addr %s1114, 8
        %s1116 = scalar_lea.vmem [#allocation8], %s1115
        // Predicated region
        $region53: #{tpu_custom_call.1} parent=39 // pred_check
          %p1117 = pneg %p151
        $region54: #{tpu_custom_call.1} parent=39 // pred_check_branch
          %1119 = sbr.rel (%p1117) target = $region56
        $region55: #{tpu_custom_call.1} parent=39 // pred_region
          %s1121 = ssub.s32 128, 128
          %1122 = vsyncadd %s1113, %s1121
          %s1123 = smul.addr %s23, 128
          %s1124 = scalar_lea.hbm %s5, %s1123
          %s1126 = sshll.u32 %s1116, 4
          %s1127 = int_to_ptr.vmem [resolvable:$true] %s1126
          %1129 = dma.vmem_to_hbm [thread:$0]  %s1127, 128, %s1124, %s1113
        $region56: #{tpu_custom_call.1} parent=39 // pred_fallthru
          _
      $region40: #{tpu_custom_call.1} parent=5 // pred_fallthru
        _
      %p1130 = scmp.le.s32.totalorder 2, %s18
      // Predicated region
      $region57: #{tpu_custom_call.1} parent=5 // pred_check
        %p1131 = pneg %p1130
      $region58: #{tpu_custom_call.1} parent=5 // pred_check_branch
        %1133 = sbr.rel (%p1131) target = $region60
      $region59: #{tpu_custom_call.1} parent=5 // pred_region
        %s1134 = ssub.s32 %s18, 2
        // Predicated region
        $region61: #{tpu_custom_call.1} parent=59 // pred_check
          %p1135 = pneg %p157
        $region62: #{tpu_custom_call.1} parent=59 // pred_check_branch
          %1137 = sbr.rel (%p1135) target = $region64
        $region63: #{tpu_custom_call.1} parent=59 // pred_region
          %s1138 = sand.u32 %s142, 1
          %s1139 = scalar_lea.sflag [#allocation4], %s1138
          %s1140 = sand.u32 %s142, 1
          %s1141 = smul.addr %s1140, 8
          %s1142 = scalar_lea.vmem [#allocation8], %s1141
          %1143 = dma.done %s1139, 128
        $region64: #{tpu_custom_call.1} parent=59 // pred_fallthru
          _
      $region60: #{tpu_custom_call.1} parent=5 // pred_fallthru
        _
    $region6: #{tpu_custom_call.1} parent=1 // loop_footer
      %s22 = sadd.s32 1, %s18
    $region7: #{tpu_custom_call.1} parent=1 // loop_footer_branch
      %17 = sbr.rel target = $region3
    $region8: #{tpu_custom_call.1} parent=1 // loop_exit
      _
    %1144 = vsyncpa [#allocation3], 1
    %s1145 = scalar_lea.sflag [#allocation3], 1
    %1146 = vsyncpa %s1145, 1
    %1147 = vsyncpa [#allocation6], 1
    %1148 = vsyncpa [#allocation4], 1
    %s1149 = scalar_lea.sflag [#allocation4], 1
    %1150 = vsyncpa %s1149, 1

</llo_original>
